<compile_context>
chip_gen: v5e
topology: v5e:2x2
jax: 0.10.0
libtpu: 0.0.40
codegen_flags: <defaults>
</compile_context>

<pallas_src>
import functools

import jax
import jax.numpy as jnp
from jax import lax
from jax.experimental import pallas as pl
from jax.experimental.pallas import tpu as pltpu


def _l2_normalize(x, eps=1e-12):
    # F.normalize(x, dim=-1) == x / max(||x||_2, eps)
    # sqrt(max(sum(x^2), eps^2)) == max(||x||_2, eps)  -> rsqrt-multiply (EUP op).
    ss = jnp.sum(x * x, axis=-1, keepdims=True)
    return x * lax.rsqrt(jnp.maximum(ss, eps * eps))


def infonce_kernel(q_ref, p_row_ref, p_col_ref, n_col_ref, loss_ref,
                   qn_s, t_s, m_s, l_s, *, inv_temperature, matmul_dtype):
    j = pl.program_id(1)
    n_col_steps = pl.num_programs(1)

    @pl.when(j == 0)
    def _init():
        q = q_ref[...].astype(jnp.float32)
        p = p_row_ref[...].astype(jnp.float32)
        # Fold 1/temperature once into the query side: it then scales both
        # similarity blocks and the target logit for free.
        qn = _l2_normalize(q) * inv_temperature
        pn = _l2_normalize(p)
        qn_s[...] = qn
        # labels = arange(B)  =>  target logit for row r is qn[r] . pn[r].
        t_s[...] = jnp.sum(qn * pn, axis=-1, keepdims=True)
        m_s[...] = jnp.full_like(m_s, -jnp.inf)
        l_s[...] = jnp.zeros_like(l_s)

    qn = qn_s[...].astype(matmul_dtype)
    pc = _l2_normalize(p_col_ref[...].astype(jnp.float32)).astype(matmul_dtype)
    nc = _l2_normalize(n_col_ref[...].astype(jnp.float32)).astype(matmul_dtype)

    # Contract dim 1 of both operands: RHS transpose is fused into the MXU op.
    dn = (((1,), (1,)), ((), ()))
    lp = lax.dot_general(qn, pc, dn, preferred_element_type=jnp.float32)
    ln = lax.dot_general(qn, nc, dn, preferred_element_type=jnp.float32)

    # Online (split) logsumexp over the pos and neg blocks — no concat.
    m_prev = m_s[...]
    m_new = jnp.maximum(
        m_prev,
        jnp.maximum(jnp.max(lp, axis=-1, keepdims=True),
                    jnp.max(ln, axis=-1, keepdims=True)))
    alpha = jnp.exp(m_prev - m_new)
    l_s[...] = (alpha * l_s[...]
                + jnp.sum(jnp.exp(lp - m_new), axis=-1, keepdims=True)
                + jnp.sum(jnp.exp(ln - m_new), axis=-1, keepdims=True))
    m_s[...] = m_new

    @pl.when(j == n_col_steps - 1)
    def _finalize():
        lse = m_s[...] + jnp.log(l_s[...])
        loss_ref[...] = (lse - t_s[...]).astype(loss_ref.dtype)


def _pick_tile(b, preferred):
    for t in preferred:
        if b % t == 0:
            return t
    return b  # single tile covering the whole axis


def infonce_loss(query, pos, neg, temperature, *,
                 matmul_dtype=jnp.float32, tm=None, tn=None):
    """InfoNCE forward: mean cross-entropy over [q@p.T | q@n.T] / T, labels=arange(B)."""
    assert query.shape == pos.shape == neg.shape and query.ndim == 2
    B, E = query.shape
    if tm is None:
        # Row tile: 256-aligned for v6e/v7x MXU; 128 also fine on v5e.
        tm = _pick_tile(B, (256, 128, 64, 32, 16, 8))
    if tn is None:
        # Column tile: keep (2 arrays x double-buffered (tn, E) tiles) VMEM-friendly.
        tn = _pick_tile(B, (512, 256, 128, 64, 32, 16, 8))
    assert B % tm == 0 and B % tn == 0
    grid = (B // tm, B // tn)

    kernel = functools.partial(
        infonce_kernel,
        inv_temperature=float(1.0 / temperature),
        matmul_dtype=matmul_dtype)

    per_row = pl.pallas_call(
        kernel,
        out_shape=jax.ShapeDtypeStruct((B, 1), jnp.float32),
        grid_spec=pltpu.PrefetchScalarGridSpec(
            num_scalar_prefetch=0,
            grid=grid,
            in_specs=[
                pl.BlockSpec((tm, E), lambda i, j: (i, 0)),  # query rows
                pl.BlockSpec((tm, E), lambda i, j: (i, 0)),  # pos rows (target dot)
                pl.BlockSpec((tn, E), lambda i, j: (j, 0)),  # pos column tiles
                pl.BlockSpec((tn, E), lambda i, j: (j, 0)),  # neg column tiles
            ],
            out_specs=pl.BlockSpec((tm, 1), lambda i, j: (i, 0)),
            scratch_shapes=[
                pltpu.VMEM((tm, E), jnp.float32),  # normalized query * 1/T
                pltpu.VMEM((tm, 1), jnp.float32),  # target logit
                pltpu.VMEM((tm, 1), jnp.float32),  # running max
                pltpu.VMEM((tm, 1), jnp.float32),  # running sum-exp
            ]),
        compiler_params=pltpu.CompilerParams(
            dimension_semantics=("parallel", "arbitrary")),
    )(query, pos, pos, neg)

    # Mean reduction over the per-row losses happens in the wrapper.
    return jnp.mean(per_row)


def _reference(query, pos, neg, temperature):
    qn = query / jnp.maximum(jnp.linalg.norm(query, axis=-1, keepdims=True), 1e-12)
    pn = pos / jnp.maximum(jnp.linalg.norm(pos, axis=-1, keepdims=True), 1e-12)
    nn_ = neg / jnp.maximum(jnp.linalg.norm(neg, axis=-1, keepdims=True), 1e-12)
    logits = jnp.concatenate((qn @ pn.T, qn @ nn_.T), axis=1) / temperature
    b = query.shape[0]
    return jnp.mean(jax.nn.logsumexp(logits, axis=-1)
                    - logits[jnp.arange(b), jnp.arange(b)])


if __name__ == "__main__":
    temperature = 0.1
    key = jax.random.PRNGKey(0)

    # --- small shape (matches the module's toy usage), f32 MXU, strict check ---
    B, E = 8, 32
    kq, kp, kn = jax.random.split(key, 3)
    query = jax.random.normal(kq, (B, E), dtype=jnp.float32)
    pos = jax.random.normal(kp, (B, E), dtype=jnp.float32)
    neg = jax.random.normal(kn, (B, E), dtype=jnp.float32)

    loss = infonce_loss(query, pos, neg, temperature)
    jax.block_until_ready(loss)
    ref = _reference(query, pos, neg, temperature)
    assert jnp.allclose(loss, ref, atol=1e-5, rtol=1e-5), (loss, ref)

    # --- multi-tile grid + bf16-MXU fast path (v6e/v7x), looser bf16 tolerance ---
    B2, E2 = 512, 256
    k2 = jax.random.split(jax.random.PRNGKey(1), 3)
    q2 = jax.random.normal(k2[0], (B2, E2), dtype=jnp.float32)
    p2 = jax.random.normal(k2[1], (B2, E2), dtype=jnp.float32)
    n2 = jax.random.normal(k2[2], (B2, E2), dtype=jnp.float32)

    loss2 = infonce_loss(q2, p2, n2, temperature,
                         matmul_dtype=jnp.bfloat16, tm=256, tn=128)
    jax.block_until_ready(loss2)
    ref2 = _reference(q2, p2, n2, temperature)
    assert jnp.isfinite(loss2)
    assert jnp.allclose(loss2, ref2, atol=5e-2, rtol=5e-2), (loss2, ref2)

    print("KERNEL_OK")
</pallas_src>

<mosaic_0001>
module attributes {stable_mosaic.version = 11 : i64} {
  func.func @infonce_kernel(%arg0: i32, %arg1: i32, %arg2: memref<8x32xf32, #tpu.memory_space<vmem>>, %arg3: memref<8x32xf32, #tpu.memory_space<vmem>>, %arg4: memref<8x32xf32, #tpu.memory_space<vmem>>, %arg5: memref<8x32xf32, #tpu.memory_space<vmem>>, %arg6: memref<8x1xf32, #tpu.memory_space<vmem>>, %arg7: memref<8x32xf32, #tpu.memory_space<vmem>>, %arg8: memref<8x1xf32, #tpu.memory_space<vmem>>, %arg9: memref<8x1xf32, #tpu.memory_space<vmem>>, %arg10: memref<8x1xf32, #tpu.memory_space<vmem>>) attributes {dimension_semantics = [#tpu.dimension_semantics<parallel>, #tpu.dimension_semantics<arbitrary>], iteration_bounds = array<i64: 1, 1>, scalar_prefetch = 0 : i64, scratch_operands = 4 : i64, tpu.core_type = #tpu.core_type<tc>, window_params = [{transform_indices = @transform_0, window_bounds = array<i64: 8, 32>}, {transform_indices = @transform_1, window_bounds = array<i64: 8, 32>}, {transform_indices = @transform_2, window_bounds = array<i64: 8, 32>}, {transform_indices = @transform_3, window_bounds = array<i64: 8, 32>}, {transform_indices = @transform_4, window_bounds = array<i64: 8, 1>}]} {
    %c0_i32 = arith.constant 0 : i32
    %0 = arith.cmpi eq, %arg1, %c0_i32 : i32
    %1 = arith.extui %0 : i1 to i32
    %c0_i32_0 = arith.constant 0 : i32
    %2 = arith.cmpi ne, %1, %c0_i32_0 : i32
    scf.if %2 {
      %c0_25 = arith.constant 0 : index
      %c0_26 = arith.constant 0 : index
      %52 = vector.load %arg2[%c0_25, %c0_26] : memref<8x32xf32, #tpu.memory_space<vmem>>, vector<8x32xf32>
      %c0_27 = arith.constant 0 : index
      %c0_28 = arith.constant 0 : index
      %53 = vector.load %arg3[%c0_27, %c0_28] : memref<8x32xf32, #tpu.memory_space<vmem>>, vector<8x32xf32>
      %54 = arith.mulf %52, %52 : vector<8x32xf32>
      %cst_29 = arith.constant dense<0.000000e+00> : vector<8xf32>
      %55 = vector.multi_reduction <add>, %54, %cst_29 [1] : vector<8x32xf32> to vector<8xf32>
      %56 = vector.shape_cast %55 : vector<8xf32> to vector<8x1xf32>
      %cst_30 = arith.constant 1.000000e-24 : f32
      %57 = vector.broadcast %cst_30 : f32 to vector<8x1xf32>
      %58 = arith.maximumf %56, %57 : vector<8x1xf32>
      %59 = math.rsqrt %58 : vector<8x1xf32>
      %60 = vector.broadcast %59 : vector<8x1xf32> to vector<8x32xf32>
      %61 = arith.mulf %52, %60 : vector<8x32xf32>
      %cst_31 = arith.constant 1.000000e+01 : f32
      %62 = vector.broadcast %cst_31 : f32 to vector<8x32xf32>
      %63 = arith.mulf %61, %62 : vector<8x32xf32>
      %64 = arith.mulf %53, %53 : vector<8x32xf32>
      %cst_32 = arith.constant dense<0.000000e+00> : vector<8xf32>
      %65 = vector.multi_reduction <add>, %64, %cst_32 [1] : vector<8x32xf32> to vector<8xf32>
      %66 = vector.shape_cast %65 : vector<8xf32> to vector<8x1xf32>
      %cst_33 = arith.constant 1.000000e-24 : f32
      %67 = vector.broadcast %cst_33 : f32 to vector<8x1xf32>
      %68 = arith.maximumf %66, %67 : vector<8x1xf32>
      %69 = math.rsqrt %68 : vector<8x1xf32>
      %70 = vector.broadcast %69 : vector<8x1xf32> to vector<8x32xf32>
      %71 = arith.mulf %53, %70 : vector<8x32xf32>
      %c0_34 = arith.constant 0 : index
      %c0_35 = arith.constant 0 : index
      %72 = vector.load %arg7[%c0_34, %c0_35] : memref<8x32xf32, #tpu.memory_space<vmem>>, vector<8x32xf32>
      tpu.vector_store %arg7[%c0_34, %c0_35], %63 {strides = array<i32>} : memref<8x32xf32, #tpu.memory_space<vmem>>, vector<8x32xf32>,
      %73 = arith.mulf %63, %71 : vector<8x32xf32>
      %cst_36 = arith.constant dense<0.000000e+00> : vector<8xf32>
      %74 = vector.multi_reduction <add>, %73, %cst_36 [1] : vector<8x32xf32> to vector<8xf32>
      %75 = vector.shape_cast %74 : vector<8xf32> to vector<8x1xf32>
      %c0_37 = arith.constant 0 : index
      %c0_38 = arith.constant 0 : index
      %76 = vector.load %arg8[%c0_37, %c0_38] : memref<8x1xf32, #tpu.memory_space<vmem>>, vector<8x1xf32>
      tpu.vector_store %arg8[%c0_37, %c0_38], %75 {strides = array<i32>} : memref<8x1xf32, #tpu.memory_space<vmem>>, vector<8x1xf32>,
      %cst_39 = arith.constant 0xFF800000 : f32
      %77 = vector.broadcast %cst_39 : f32 to vector<8x1xf32>
      %c0_40 = arith.constant 0 : index
      %c0_41 = arith.constant 0 : index
      %78 = vector.load %arg9[%c0_40, %c0_41] : memref<8x1xf32, #tpu.memory_space<vmem>>, vector<8x1xf32>
      tpu.vector_store %arg9[%c0_40, %c0_41], %77 {strides = array<i32>} : memref<8x1xf32, #tpu.memory_space<vmem>>, vector<8x1xf32>,
      %cst_42 = arith.constant 0.000000e+00 : f32
      %79 = vector.broadcast %cst_42 : f32 to vector<8x1xf32>
      %c0_43 = arith.constant 0 : index
      %c0_44 = arith.constant 0 : index
      %80 = vector.load %arg10[%c0_43, %c0_44] : memref<8x1xf32, #tpu.memory_space<vmem>>, vector<8x1xf32>
      tpu.vector_store %arg10[%c0_43, %c0_44], %79 {strides = array<i32>} : memref<8x1xf32, #tpu.memory_space<vmem>>, vector<8x1xf32>,
    } else {
    }
    %c0 = arith.constant 0 : index
    %c0_1 = arith.constant 0 : index
    %3 = vector.load %arg7[%c0, %c0_1] : memref<8x32xf32, #tpu.memory_space<vmem>>, vector<8x32xf32>
    %c0_2 = arith.constant 0 : index
    %c0_3 = arith.constant 0 : index
    %4 = vector.load %arg4[%c0_2, %c0_3] : memref<8x32xf32, #tpu.memory_space<vmem>>, vector<8x32xf32>
    %5 = arith.mulf %4, %4 : vector<8x32xf32>
    %cst = arith.constant dense<0.000000e+00> : vector<8xf32>
    %6 = vector.multi_reduction <add>, %5, %cst [1] : vector<8x32xf32> to vector<8xf32>
    %7 = vector.shape_cast %6 : vector<8xf32> to vector<8x1xf32>
    %cst_4 = arith.constant 1.000000e-24 : f32
    %8 = vector.broadcast %cst_4 : f32 to vector<8x1xf32>
    %9 = arith.maximumf %7, %8 : vector<8x1xf32>
    %10 = math.rsqrt %9 : vector<8x1xf32>
    %11 = vector.broadcast %10 : vector<8x1xf32> to vector<8x32xf32>
    %12 = arith.mulf %4, %11 : vector<8x32xf32>
    %c0_5 = arith.constant 0 : index
    %c0_6 = arith.constant 0 : index
    %13 = vector.load %arg5[%c0_5, %c0_6] : memref<8x32xf32, #tpu.memory_space<vmem>>, vector<8x32xf32>
    %14 = arith.mulf %13, %13 : vector<8x32xf32>
    %cst_7 = arith.constant dense<0.000000e+00> : vector<8xf32>
    %15 = vector.multi_reduction <add>, %14, %cst_7 [1] : vector<8x32xf32> to vector<8xf32>
    %16 = vector.shape_cast %15 : vector<8xf32> to vector<8x1xf32>
    %cst_8 = arith.constant 1.000000e-24 : f32
    %17 = vector.broadcast %cst_8 : f32 to vector<8x1xf32>
    %18 = arith.maximumf %16, %17 : vector<8x1xf32>
    %19 = math.rsqrt %18 : vector<8x1xf32>
    %20 = vector.broadcast %19 : vector<8x1xf32> to vector<8x32xf32>
    %21 = arith.mulf %13, %20 : vector<8x32xf32>
    %cst_9 = arith.constant dense<0.000000e+00> : vector<8x8xf32>
    %22 = tpu.matmul %3, %12, %cst_9 {dimension_numbers = #tpu.dot_dimension_numbers<[1], [1], [0], [0], [0, 0, 1, 0], [], []>} : vector<8x32xf32>, vector<8x32xf32>, vector<8x8xf32> -> vector<8x8xf32>
    %cst_10 = arith.constant dense<0.000000e+00> : vector<8x8xf32>
    %23 = tpu.matmul %3, %21, %cst_10 {dimension_numbers = #tpu.dot_dimension_numbers<[1], [1], [0], [0], [0, 0, 1, 0], [], []>} : vector<8x32xf32>, vector<8x32xf32>, vector<8x8xf32> -> vector<8x8xf32>
    %c0_11 = arith.constant 0 : index
    %c0_12 = arith.constant 0 : index
    %24 = vector.load %arg9[%c0_11, %c0_12] : memref<8x1xf32, #tpu.memory_space<vmem>>, vector<8x1xf32>
    %cst_13 = arith.constant dense<0xFF800000> : vector<8xf32>
    %25 = vector.multi_reduction <maximumf>, %22, %cst_13 [1] : vector<8x8xf32> to vector<8xf32>
    %26 = vector.shape_cast %25 : vector<8xf32> to vector<8x1xf32>
    %cst_14 = arith.constant dense<0xFF800000> : vector<8xf32>
    %27 = vector.multi_reduction <maximumf>, %23, %cst_14 [1] : vector<8x8xf32> to vector<8xf32>
    %28 = vector.shape_cast %27 : vector<8xf32> to vector<8x1xf32>
    %29 = arith.maximumf %26, %28 : vector<8x1xf32>
    %30 = arith.maximumf %24, %29 : vector<8x1xf32>
    %31 = arith.subf %24, %30 : vector<8x1xf32>
    %32 = math.exp %31 : vector<8x1xf32>
    %c0_15 = arith.constant 0 : index
    %c0_16 = arith.constant 0 : index
    %33 = vector.load %arg10[%c0_15, %c0_16] : memref<8x1xf32, #tpu.memory_space<vmem>>, vector<8x1xf32>
    %34 = arith.mulf %32, %33 : vector<8x1xf32>
    %35 = vector.broadcast %30 : vector<8x1xf32> to vector<8x8xf32>
    %36 = arith.subf %22, %35 : vector<8x8xf32>
    %37 = math.exp %36 : vector<8x8xf32>
    %cst_17 = arith.constant dense<0.000000e+00> : vector<8xf32>
    %38 = vector.multi_reduction <add>, %37, %cst_17 [1] : vector<8x8xf32> to vector<8xf32>
    %39 = vector.shape_cast %38 : vector<8xf32> to vector<8x1xf32>
    %40 = arith.addf %34, %39 : vector<8x1xf32>
    %41 = vector.broadcast %30 : vector<8x1xf32> to vector<8x8xf32>
    %42 = arith.subf %23, %41 : vector<8x8xf32>
    %43 = math.exp %42 : vector<8x8xf32>
    %cst_18 = arith.constant dense<0.000000e+00> : vector<8xf32>
    %44 = vector.multi_reduction <add>, %43, %cst_18 [1] : vector<8x8xf32> to vector<8xf32>
    %45 = vector.shape_cast %44 : vector<8xf32> to vector<8x1xf32>
    %46 = arith.addf %40, %45 : vector<8x1xf32>
    %c0_19 = arith.constant 0 : index
    %c0_20 = arith.constant 0 : index
    %47 = vector.load %arg10[%c0_19, %c0_20] : memref<8x1xf32, #tpu.memory_space<vmem>>, vector<8x1xf32>
    tpu.vector_store %arg10[%c0_19, %c0_20], %46 {strides = array<i32>} : memref<8x1xf32, #tpu.memory_space<vmem>>, vector<8x1xf32>,
    %c0_21 = arith.constant 0 : index
    %c0_22 = arith.constant 0 : index
    %48 = vector.load %arg9[%c0_21, %c0_22] : memref<8x1xf32, #tpu.memory_space<vmem>>, vector<8x1xf32>
    tpu.vector_store %arg9[%c0_21, %c0_22], %30 {strides = array<i32>} : memref<8x1xf32, #tpu.memory_space<vmem>>, vector<8x1xf32>,
    %c0_i32_23 = arith.constant 0 : i32
    %49 = arith.cmpi eq, %arg1, %c0_i32_23 : i32
    %50 = arith.extui %49 : i1 to i32
    %c0_i32_24 = arith.constant 0 : i32
    %51 = arith.cmpi ne, %50, %c0_i32_24 : i32
    scf.if %51 {
      %c0_25 = arith.constant 0 : index
      %c0_26 = arith.constant 0 : index
      %52 = vector.load %arg9[%c0_25, %c0_26] : memref<8x1xf32, #tpu.memory_space<vmem>>, vector<8x1xf32>
      %c0_27 = arith.constant 0 : index
      %c0_28 = arith.constant 0 : index
      %53 = vector.load %arg10[%c0_27, %c0_28] : memref<8x1xf32, #tpu.memory_space<vmem>>, vector<8x1xf32>
      %54 = math.log %53 : vector<8x1xf32>
      %55 = arith.addf %52, %54 : vector<8x1xf32>
      %c0_29 = arith.constant 0 : index
      %c0_30 = arith.constant 0 : index
      %56 = vector.load %arg8[%c0_29, %c0_30] : memref<8x1xf32, #tpu.memory_space<vmem>>, vector<8x1xf32>
      %57 = arith.subf %55, %56 : vector<8x1xf32>
      %c0_31 = arith.constant 0 : index
      %c0_32 = arith.constant 0 : index
      %58 = vector.load %arg6[%c0_31, %c0_32] : memref<8x1xf32, #tpu.memory_space<vmem>>, vector<8x1xf32>
      tpu.vector_store %arg6[%c0_31, %c0_32], %57 {strides = array<i32>} : memref<8x1xf32, #tpu.memory_space<vmem>>, vector<8x1xf32>,
    } else {
    }
    return
  }
  func.func @transform_0(%arg0: i32, %arg1: i32) -> (i32, i32) {
    %c0_i32 = arith.constant 0 : i32
    %c0_i32_0 = arith.constant 0 : i32
    return %arg0, %c0_i32 : i32, i32
  }
  func.func @transform_1(%arg0: i32, %arg1: i32) -> (i32, i32) {
    %c0_i32 = arith.constant 0 : i32
    %c0_i32_0 = arith.constant 0 : i32
    return %arg0, %c0_i32 : i32, i32
  }
  func.func @transform_2(%arg0: i32, %arg1: i32) -> (i32, i32) {
    %c0_i32 = arith.constant 0 : i32
    %c0_i32_0 = arith.constant 0 : i32
    return %arg1, %c0_i32 : i32, i32
  }
  func.func @transform_3(%arg0: i32, %arg1: i32) -> (i32, i32) {
    %c0_i32 = arith.constant 0 : i32
    %c0_i32_0 = arith.constant 0 : i32
    return %arg1, %c0_i32 : i32, i32
  }
  func.func @transform_4(%arg0: i32, %arg1: i32) -> (i32, i32) {
    %c0_i32 = arith.constant 0 : i32
    %c0_i32_0 = arith.constant 0 : i32
    return %arg0, %c0_i32 : i32, i32
  }
}

</mosaic_0001>

<llo_original>
// kernel: tpu_custom_call.1
$region0: #{tpu_custom_call.1}
  #allocation0 [shape = 'u32[]', space=smem, size = 0x4, offset = 0x4, fixed_abs, tag = 'smem constant byte address 0x4 - core index']
  #allocation1 [shape = 'u32[72,128]{1,0:T(1,128)}', space=vmem, size = 0x9000, scoped, tag = 'internal scratch']
  #allocation2 [shape = 'f32[8,32]{1,0:T(8,128)}', space=vmem, size = 0x1000, scoped, tag = 'scratch operand']
  #allocation3 [shape = 'f32[8,1]{1,0:T(8,128)}', space=vmem, size = 0x1000, scoped, tag = 'scratch operand']
  #allocation4 [shape = 'f32[8,1]{1,0:T(8,128)}', space=vmem, size = 0x1000, scoped, tag = 'scratch operand']
  #allocation5 [shape = 'f32[8,1]{1,0:T(8,128)}', space=vmem, size = 0x1000, scoped, tag = 'scratch operand']
  %s0 = inlined_call_operand.hbm [shape: f32[8,32], index: 0, kind: input, shape index: {}]
  %s1 = inlined_call_operand.hbm [shape: f32[8,32], index: 1, kind: input, shape index: {}]
  %s2 = inlined_call_operand.hbm [shape: f32[8,32], index: 2, kind: input, shape index: {}]
  %s3 = inlined_call_operand.hbm [shape: f32[8,32], index: 3, kind: input, shape index: {}]
  %s4 = inlined_call_operand.vmem [shape: f32[8,1], index: 4, kind: output, shape index: {}]
  %s5 = sld [smem:[#allocation0]]
  $region50: #{tpu_custom_call.1} parent=0
    _
  %s7 = ssub.s32 1, %s5
  %s8 = scalar_select 0, %s7, %s5
  $region1: #{tpu_custom_call.1} parent=0
    #allocation6 [shape = 'u8[4096]{0}', space=vmem, size = 0x1000, scoped, tag = 'input window, operand 0, single buffered']
    #allocation7 [shape = 's32[1]{0}', space=sflag, size = 0x4, scoped, tag = 'scoped memory for tpu_custom_call.1']
    #allocation8 [shape = 'u8[4096]{0}', space=vmem, size = 0x1000, scoped, tag = 'input window, operand 1, single buffered']
    #allocation9 [shape = 's32[1]{0}', space=sflag, size = 0x4, scoped, tag = 'scoped memory for tpu_custom_call.1']
    #allocation10 [shape = 'u8[4096]{0}', space=vmem, size = 0x1000, scoped, tag = 'input window, operand 2, single buffered']
    #allocation11 [shape = 'u8[4096]{0}', space=vmem, size = 0x1000, scoped, tag = 'input window, operand 3, single buffered']
    #allocation12 [shape = 's32[1]{0}', space=sflag, size = 0x4, scoped, tag = 'scoped memory for tpu_custom_call.1']
    %9 = vsyncpa [#allocation7], 0
    %10 = vsyncpa [#allocation9], 0
    %11 = vsyncpa [#allocation12], 0
    // Predicated region
    $region2: #{tpu_custom_call.1} parent=1 // pred_check
      _
    $region3: #{tpu_custom_call.1} parent=1 // pred_check_branch
      %13 = sbr.rel (0) target = $region5
    $region4: #{tpu_custom_call.1} parent=1 // pred_region
      %15 = vsyncadd [#allocation7], 0
      %s17 = sshll.u32 %s0, 4
      %s18 = int_to_ptr.hbm [resolvable:$true] %s17
      %s19 = sshll.u32 [#allocation6], 4
      %s20 = int_to_ptr.vmem [resolvable:$true] %s19
      %22 = dma.hbm_to_vmem [thread:$0]  %s18, 128, %s20, [#allocation7]
    $region5: #{tpu_custom_call.1} parent=1 // pred_fallthru
      _
    // Predicated region
    $region6: #{tpu_custom_call.1} parent=1 // pred_check
      _
    $region7: #{tpu_custom_call.1} parent=1 // pred_check_branch
      %24 = sbr.rel (0) target = $region9
    $region8: #{tpu_custom_call.1} parent=1 // pred_region
      %26 = vsyncadd [#allocation9], 0
      %s28 = sshll.u32 %s1, 4
      %s29 = int_to_ptr.hbm [resolvable:$true] %s28
      %s30 = sshll.u32 [#allocation8], 4
      %s31 = int_to_ptr.vmem [resolvable:$true] %s30
      %33 = dma.hbm_to_vmem [thread:$0]  %s29, 128, %s31, [#allocation9]
    $region9: #{tpu_custom_call.1} parent=1 // pred_fallthru
      _
    // Predicated region
    $region10: #{tpu_custom_call.1} parent=1 // pred_check
      _
    $region11: #{tpu_custom_call.1} parent=1 // pred_check_branch
      %35 = sbr.rel (0) target = $region13
    $region12: #{tpu_custom_call.1} parent=1 // pred_region
      %37 = vsyncadd [#allocation9], 0
      %s39 = sshll.u32 %s2, 4
      %s40 = int_to_ptr.hbm [resolvable:$true] %s39
      %s41 = sshll.u32 [#allocation10], 4
      %s42 = int_to_ptr.vmem [resolvable:$true] %s41
      %44 = dma.hbm_to_vmem [thread:$0]  %s40, 128, %s42, [#allocation9]
    $region13: #{tpu_custom_call.1} parent=1 // pred_fallthru
      _
    // Predicated region
    $region14: #{tpu_custom_call.1} parent=1 // pred_check
      _
    $region15: #{tpu_custom_call.1} parent=1 // pred_check_branch
      %46 = sbr.rel (0) target = $region17
    $region16: #{tpu_custom_call.1} parent=1 // pred_region
      %48 = vsyncadd [#allocation12], 0
      %s50 = sshll.u32 %s3, 4
      %s51 = int_to_ptr.hbm [resolvable:$true] %s50
      %s52 = sshll.u32 [#allocation11], 4
      %s53 = int_to_ptr.vmem [resolvable:$true] %s52
      %55 = dma.hbm_to_vmem [thread:$0]  %s51, 128, %s53, [#allocation12]
    $region17: #{tpu_custom_call.1} parent=1 // pred_fallthru
      _
    // Predicated region
    $region18: #{tpu_custom_call.1} parent=1 // pred_check
      _
    $region19: #{tpu_custom_call.1} parent=1 // pred_check_branch
      %57 = sbr.rel (0) target = $region21
    $region20: #{tpu_custom_call.1} parent=1 // pred_region
      %59 = dma.done [#allocation7], 128
    $region21: #{tpu_custom_call.1} parent=1 // pred_fallthru
      _
    // Predicated region
    $region22: #{tpu_custom_call.1} parent=1 // pred_check
      _
    $region23: #{tpu_custom_call.1} parent=1 // pred_check_branch
      %61 = sbr.rel (0) target = $region25
    $region24: #{tpu_custom_call.1} parent=1 // pred_region
      %63 = dma.done [#allocation9], 128
    $region25: #{tpu_custom_call.1} parent=1 // pred_fallthru
      _
    // Predicated region
    $region26: #{tpu_custom_call.1} parent=1 // pred_check
      _
    $region27: #{tpu_custom_call.1} parent=1 // pred_check_branch
      %65 = sbr.rel (0) target = $region29
    $region28: #{tpu_custom_call.1} parent=1 // pred_region
      %67 = dma.done [#allocation9], 128
    $region29: #{tpu_custom_call.1} parent=1 // pred_fallthru
      _
    // Predicated region
    $region30: #{tpu_custom_call.1} parent=1 // pred_check
      _
    $region31: #{tpu_custom_call.1} parent=1 // pred_check_branch
      %69 = sbr.rel (0) target = $region33
    $region32: #{tpu_custom_call.1} parent=1 // pred_region
      %71 = dma.done [#allocation12], 128
    $region33: #{tpu_custom_call.1} parent=1 // pred_fallthru
      _
    %p72 = scmp.eq.s32.totalorder 0, 0
    // Predicated region
    $region34: #{tpu_custom_call.1} parent=1 // pred_check
      %p73 = pneg %p72
    $region35: #{tpu_custom_call.1} parent=1 // pred_check_branch
      %75 = sbr.rel (%p73) target = $region37
    $region36: #{tpu_custom_call.1} parent=1 // pred_region
      %v76 = vld [vmem:[#allocation6] sm:$0xff]
      %v77 = vld [vmem:[#allocation8] sm:$0xff]
      %v78 = vmul.f32 %v76, %v76
      %vm79 = vcmask 261120
      %v80 = vsel %vm79, %v78, 0.0
      %81 = vadd.xlane.f32.xlu0 %v80
      %v82 = vpop.xlane.xlu0 %81
      %v83 = vmax.f32 %v82, 1e-24
      %v84 = vrsqrt.pop %v83
      %v85 = vmul.f32 %v84, %v83
      %v86 = vmul.f32 %v85, %v84
      %v87 = vmul.f32 0.5, %v86
      %v88 = vsub.f32 1.5, %v87
      %v89 = vmul.f32 %v84, %v88
      %vm90 = vweird.f32 %v83
      %vm91 = vweird.f32 %v84
      %vm92 = vmor %vm90, %vm91
      %v93 = vsel %vm92, %v84, %v89
      %v94 = vmul.f32 %v76, %v93
      %v95 = vmul.f32 %v94, 10.0
      %v96 = vmul.f32 %v77, %v77
      %v97 = vsel %vm79, %v96, 0.0
      %98 = vadd.xlane.f32.xlu0 %v97
      %v99 = vpop.xlane.xlu0 %98
      %v100 = vmax.f32 %v99, 1e-24
      %v101 = vrsqrt.pop %v100
      %v102 = vmul.f32 %v101, %v100
      %v103 = vmul.f32 %v102, %v101
      %v104 = vmul.f32 0.5, %v103
      %v105 = vsub.f32 1.5, %v104
      %v106 = vmul.f32 %v101, %v105
      %vm107 = vweird.f32 %v100
      %vm108 = vweird.f32 %v101
      %vm109 = vmor %vm107, %vm108
      %v110 = vsel %vm109, %v101, %v106
      %v111 = vmul.f32 %v77, %v110
      %112 = vst.msk [vmem:[#allocation2] sm:$0xff] %vm79, %v95
      %v113 = vmul.f32 %v95, %v111
      %v114 = vsel %vm79, %v113, 0.0
      %115 = vadd.xlane.f32.xlu0 %v114
      %v116 = vpop.xlane.xlu0 %115
      %vm117 = vcmask 7168
      %118 = vst.msk [vmem:[#allocation3] sm:$0xff] %vm117, %v116
      %119 = vst.msk [vmem:[#allocation4] sm:$0xff] %vm117, -inf
      %120 = vst.msk [vmem:[#allocation5] sm:$0xff] %vm117, 0.0
    $region37: #{tpu_custom_call.1} parent=1 // pred_fallthru
      _
    %v121 = vld [vmem:[#allocation2] sm:$0xff]
    %v122 = vld [vmem:[#allocation10] sm:$0xff]
    %v123 = vmul.f32 %v122, %v122
    %vm124 = vcmask 261120
    %v125 = vsel %vm124, %v123, 0.0
    %126 = vadd.xlane.f32.xlu0 %v125
    %v127 = vpop.xlane.xlu0 %126
    %v128 = vmax.f32 %v127, 1e-24
    %v129 = vrsqrt.pop %v128
    %v130 = vmul.f32 %v129, %v128
    %v131 = vmul.f32 %v130, %v129
    %v132 = vmul.f32 0.5, %v131
    %v133 = vsub.f32 1.5, %v132
    %v134 = vmul.f32 %v129, %v133
    %vm135 = vweird.f32 %v128
    %vm136 = vweird.f32 %v129
    %vm137 = vmor %vm135, %vm136
    %v138 = vsel %vm137, %v129, %v134
    %v139 = vmul.f32 %v122, %v138
    %v140 = vld [vmem:[#allocation11] sm:$0xff]
    %v141 = vmul.f32 %v140, %v140
    %v142 = vsel %vm124, %v141, 0.0
    %143 = vadd.xlane.f32.xlu0 %v142
    %v144 = vpop.xlane.xlu0 %143
    %v145 = vmax.f32 %v144, 1e-24
    %v146 = vrsqrt.pop %v145
    %v147 = vmul.f32 %v146, %v145
    %v148 = vmul.f32 %v147, %v146
    %v149 = vmul.f32 0.5, %v148
    %v150 = vsub.f32 1.5, %v149
    %v151 = vmul.f32 %v146, %v150
    %vm152 = vweird.f32 %v145
    %vm153 = vweird.f32 %v146
    %vm154 = vmor %vm152, %vm153
    %v155 = vsel %vm154, %v146, %v151
    %v156 = vmul.f32 %v140, %v155
    %v158 = vsel %vm124, %v121, 0
    %v161 = vsel %vm124, %v139, 0
    %163 = vmatpush.xpose.msra.mxu0 0.0
    %164 = vmatpush.xpose.msra.mxu0 0.0
    %165 = vmatpush.xpose.msra.mxu0 0.0
    %166 = vmatpush.xpose.msra.mxu0 0.0
    %167 = vmatpush.xpose.msra.mxu0 0.0
    %168 = vmatpush.xpose.msra.mxu0 0.0
    %169 = vmatpush.xpose.msra.mxu0 0.0
    %170 = vmatpush.xpose.msra.mxu0 0.0
    %171 = vmatpush.xpose.msra.mxu0 0.0
    %172 = vmatpush.xpose.msra.mxu0 0.0
    %173 = vmatpush.xpose.msra.mxu0 0.0
    %174 = vmatpush.xpose.msra.mxu0 0.0
    %175 = vmatpush.xpose.msra.mxu0 0.0
    %176 = vmatpush.xpose.msra.mxu0 0.0
    %177 = vmatpush.xpose.msra.mxu0 0.0
    %178 = vmatpush.xpose.msra.mxu0 %v161
    %179 = vmatmul.f32.gmra.mxu0 %v158
    %v180 = vpop.f32.mrf.mxu0
    %v181 = vadd.f32 0.0, %v180
    %182 = vdwg.mxu0
    %v184 = vsel %vm124, %v156, 0
    %186 = vmatpush.xpose.msra.mxu0 0.0
    %187 = vmatpush.xpose.msra.mxu0 0.0
    %188 = vmatpush.xpose.msra.mxu0 0.0
    %189 = vmatpush.xpose.msra.mxu0 0.0
    %190 = vmatpush.xpose.msra.mxu0 0.0
    %191 = vmatpush.xpose.msra.mxu0 0.0
    %192 = vmatpush.xpose.msra.mxu0 0.0
    %193 = vmatpush.xpose.msra.mxu0 0.0
    %194 = vmatpush.xpose.msra.mxu0 0.0
    %195 = vmatpush.xpose.msra.mxu0 0.0
    %196 = vmatpush.xpose.msra.mxu0 0.0
    %197 = vmatpush.xpose.msra.mxu0 0.0
    %198 = vmatpush.xpose.msra.mxu0 0.0
    %199 = vmatpush.xpose.msra.mxu0 0.0
    %200 = vmatpush.xpose.msra.mxu0 0.0
    %201 = vmatpush.xpose.msra.mxu0 %v184
    %202 = vmatmul.f32.gmra.mxu0 %v158
    %v203 = vpop.f32.mrf.mxu0
    %v204 = vadd.f32 0.0, %v203
    %205 = vdwg.mxu0
    %v206 = vld [vmem:[#allocation4] sm:$0xff]
    %vm207 = vcmask 64512
    %v208 = vsel %vm207, %v181, -inf
    %209 = vmax.xlane.f32.xlu0 %v208
    %v210 = vpop.xlane.xlu0 %209
    %v211 = vsel %vm207, %v204, -inf
    %212 = vmax.xlane.f32.xlu0 %v211
    %v213 = vpop.xlane.xlu0 %212
    %v214 = vmax.f32 %v210, %v213
    %v215 = vmax.f32 %v206, %v214
    %v216 = vsub.f32 %v206, %v215
    %v217 = vmul.f32 %v216, 1.442695
    %v218 = vpow.pop %v217
    %v219 = vld [vmem:[#allocation5] sm:$0xff]
    %v220 = vmul.f32 %v218, %v219
    %222 = vset.pattern.permute.xlu0 0
    %223 = vperm.xlu0 %222, %v215
    %v224 = vpop.permute.xlu0 %223
    %v226 = vsub.f32 %v181, %v224
    %v227 = vmul.f32 %v226, 1.442695
    %v228 = vpow.pop %v227
    %v229 = vsel %vm207, %v228, 0.0
    %230 = vadd.xlane.f32.xlu0 %v229
    %v231 = vpop.xlane.xlu0 %230
    %v232 = vadd.f32 %v220, %v231
    %v233 = vsub.f32 %v204, %v224
    %v234 = vmul.f32 %v233, 1.442695
    %v235 = vpow.pop %v234
    %v236 = vsel %vm207, %v235, 0.0
    %237 = vadd.xlane.f32.xlu0 %v236
    %v238 = vpop.xlane.xlu0 %237
    %v239 = vadd.f32 %v232, %v238
    %vm240 = vcmask 7168
    %241 = vst.msk [vmem:[#allocation5] sm:$0xff] %vm240, %v239
    %242 = vst.msk [vmem:[#allocation4] sm:$0xff] %vm240, %v215
    // Predicated region
    $region38: #{tpu_custom_call.1} parent=1 // pred_check
      %p243 = pneg %p72
    $region39: #{tpu_custom_call.1} parent=1 // pred_check_branch
      %245 = sbr.rel (%p243) target = $region41
    $region40: #{tpu_custom_call.1} parent=1 // pred_region
      %v246 = vld [vmem:[#allocation4] sm:$0xff]
      %v247 = vld [vmem:[#allocation5] sm:$0xff]
      %v248 = vlog2.pop %v247
      %v249 = vmul.f32 %v248, 0.6931472
      %v250 = vadd.f32 %v246, %v249
      %v251 = vld [vmem:[#allocation3] sm:$0xff]
      %v252 = vsub.f32 %v250, %v251
      %253 = vst.msk [vmem:[%s4] sm:$0xff] %vm240, %v252
    $region41: #{tpu_custom_call.1} parent=1 // pred_fallthru
      _
    // Predicated region
    $region42: #{tpu_custom_call.1} parent=1 // pred_check
      _
    $region43: #{tpu_custom_call.1} parent=1 // pred_check_branch
      %255 = sbr.rel (0) target = $region45
    $region44: #{tpu_custom_call.1} parent=1 // pred_region
      _
    $region45: #{tpu_custom_call.1} parent=1 // pred_fallthru
      _
    // Predicated region
    $region46: #{tpu_custom_call.1} parent=1 // pred_check
      _
    $region47: #{tpu_custom_call.1} parent=1 // pred_check_branch
      %257 = sbr.rel (0) target = $region49
    $region48: #{tpu_custom_call.1} parent=1 // pred_region
      _
    $region49: #{tpu_custom_call.1} parent=1 // pred_fallthru
      _
    %258 = vsyncpa [#allocation7], 1
    %259 = vsyncpa [#allocation9], 1
    %260 = vsyncpa [#allocation12], 1

</llo_original>
